<compile_context>
chip_gen: v6e
topology: v6e:2x2x1
jax: 0.10.0
libtpu: 0.0.40
codegen_flags: <defaults>
</compile_context>

<pallas_src>
import functools

import jax
import jax.numpy as jnp
from jax.experimental import pallas as pl
from jax.experimental.pallas import tpu as pltpu


def _random_shift_kernel(shift_ref, x_ref, o_ref, pad_ref, *,
                         pad, nb, c, h, w, top):
    """Replicate-pad + per-image integer-shift crop for NB images per step.

    shift_ref : SMEM (2, N) int32 scalar prefetch; row 0 = column shift sx,
                row 1 = row shift sy, both in [0, 2*pad].
    x_ref     : VMEM (NB, C, H, W) input block
    o_ref     : VMEM (NB, C, H, W) output block
    pad_ref   : VMEM (C, top + H + pad, W) scratch.  Only the *vertical*
                replicate pad is materialized; the horizontal pad + column
                shift are folded into the one-hot selection matrix.  The
                interior sits at sublane offset `top` (a multiple of 8) so
                the bulk copy is sublane aligned.
    """
    b0 = pl.program_id(0) * nb

    # Hoisted once per grid step (JAX does not CSE broadcast_in_dim).
    src = jax.lax.broadcasted_iota(jnp.int32, (w, w), 0)   # source column
    dst = jax.lax.broadcasted_iota(jnp.int32, (w, w), 1)   # destination column

    def body(i, carry):
        b = b0 + i
        # Scalar reads first (cheap SMEM loads; keeps sst->sld forwarding).
        sx = shift_ref[0, b]          # column shift in [0, 2*pad]
        sy = shift_ref[1, b]          # row shift in [0, 2*pad]

        # Interior copy + vertical replicate pad, all via vreg load/store
        # (no blocking DMA).  Edge rows are re-sliced from the loaded value
        # instead of round-tripping through the scratch.
        img = x_ref[i]                                            # (C, H, W)
        pad_ref[:, top:top + h, :] = img
        pad_ref[:, top - pad:top, :] = jnp.broadcast_to(
            img[:, 0:1, :], (c, pad, w))
        pad_ref[:, top + h:top + h + pad, :] = jnp.broadcast_to(
            img[:, h - 1:h, :], (c, pad, w))

        # Row shift: dynamic slice on the sublane dimension of the scratch.
        rows = pad_ref[:, pl.ds(sy + (top - pad), h), :]          # (C, H, W)

        # Column shift + horizontal replicate pad folded into a one-hot
        # selection matrix: output column `dst` reads source column
        # clamp(dst + sx - pad, 0, w - 1).  One-hot product on the MXU is
        # exact with the data kept in its native dtype.
        # TODO(synk): if profiling ever shows the MXU on the critical path
        # (it should be HBM-bound), swap this for pltpu.roll + jnp.where.
        sel = (src == jnp.clip(dst + sx - pad, 0, w - 1)).astype(rows.dtype)
        out = jnp.dot(rows.reshape(c * h, w), sel,
                      preferred_element_type=jnp.float32)         # (C*H, W)
        o_ref[i] = out.reshape(c, h, w).astype(o_ref.dtype)
        return carry

    jax.lax.fori_loop(0, nb, body, 0, unroll=True)


def random_shifts_aug(x, key, pad, *, nb_max=8):
    """Pallas equivalent of RandomShiftsAug(pad).forward(x).  x: (N, C, H, W)."""
    n, c, h, w = x.shape
    assert h == w, "RandomShiftsAug assumes square images"
    assert pad >= 1

    # torch.randint(0, 2*pad + 1, size=(n, 1, 1, 2)) -> per-batch int shifts.
    # Shape (2, N) so the SMEM scalar-prefetch buffer pads cheaply (long
    # axis last).
    shifts = jax.random.randint(key, (2, n), 0, 2 * pad + 1, dtype=jnp.int32)

    top = -(-pad // 8) * 8            # pad rounded up to a multiple of 8
    itemsize = x.dtype.itemsize
    scratch_bytes = c * (top + h + pad) * w * itemsize

    # NB images per grid step: amortize the ~0.35us per-step overhead while
    # keeping (a) the grid length >= 2 (megacore shardable) and (b) the
    # double-buffered in+out footprint inside a modest VMEM budget.
    vmem_budget = 24 << 20
    nb = max(1, min(nb_max, n // 2 if n >= 2 else 1))
    while nb > 1 and (n % nb != 0 or
                      4 * nb * c * h * w * itemsize + scratch_bytes
                      > vmem_budget):
        nb -= 1

    kernel = functools.partial(_random_shift_kernel, pad=pad, nb=nb,
                               c=c, h=h, w=w, top=top)

    grid_spec = pltpu.PrefetchScalarGridSpec(
        num_scalar_prefetch=1,
        grid=(n // nb,),
        in_specs=[pl.BlockSpec((nb, c, h, w), lambda g, s: (g, 0, 0, 0))],
        out_specs=pl.BlockSpec((nb, c, h, w), lambda g, s: (g, 0, 0, 0)),
        scratch_shapes=[pltpu.VMEM((c, top + h + pad, w), x.dtype)],
    )

    # Raise the scoped-VMEM limit only when the pipelined footprint could
    # exceed the smallest default (16 MiB on v5e); stay well under v7x's
    # 64 MiB physical VMEM.
    footprint = 4 * nb * c * h * w * itemsize + scratch_bytes
    vmem_limit = min(2 * footprint, 48 << 20) if footprint > (12 << 20) else None

    out = pl.pallas_call(
        kernel,
        out_shape=jax.ShapeDtypeStruct((n, c, h, w), x.dtype),
        grid_spec=grid_spec,
        compiler_params=pltpu.CompilerParams(
            dimension_semantics=("parallel",),
            vmem_limit_bytes=vmem_limit),
    )(shifts, x)
    return out, shifts


def _reference(x, shifts, pad):
    """Pure-JAX reference: replicate pad + integer crop (== torch forward)."""
    n, c, h, w = x.shape
    padded = jnp.pad(x, ((0, 0), (0, 0), (pad, pad), (pad, pad)), mode="edge")

    def crop_one(img, sx, sy):
        return jax.lax.dynamic_slice(img, (0, sy, sx), (c, h, w))

    return jax.vmap(crop_one)(padded, shifts[0], shifts[1])


if __name__ == "__main__":
    PAD = 4
    N, C, H, W = 2, 4, 16, 16

    key = jax.random.PRNGKey(0)
    k_x, k_shift = jax.random.split(key)
    x = jax.random.normal(k_x, (N, C, H, W), dtype=jnp.float32)

    out, shifts = random_shifts_aug(x, k_shift, PAD)
    out = jax.block_until_ready(out)

    ref = _reference(x, shifts, PAD)
    assert out.shape == (N, C, H, W)
    assert out.dtype == x.dtype
    assert jnp.allclose(out, ref, atol=1e-5, rtol=1e-5), "mismatch vs reference"

    print("KERNEL_OK")
</pallas_src>

<mosaic_0001>
module attributes {stable_mosaic.version = 11 : i64} {
  func.func @_random_shift_kernel(%arg0: i32, %arg1: memref<2x2xi32, #tpu.memory_space<smem>>, %arg2: memref<1x4x16x16xf32, #tpu.memory_space<vmem>>, %arg3: memref<1x4x16x16xf32, #tpu.memory_space<vmem>>, %arg4: memref<4x28x16xf32, #tpu.memory_space<vmem>>) attributes {dimension_semantics = [#tpu.dimension_semantics<parallel>], iteration_bounds = array<i64: 2>, scalar_prefetch = 1 : i64, scratch_operands = 1 : i64, tpu.core_type = #tpu.core_type<tc>, window_params = [{transform_indices = @transform_0, window_bounds = array<i64: 1, 4, 16, 16>}, {transform_indices = @transform_1, window_bounds = array<i64: 1, 4, 16, 16>}]} {
    %c1_i32 = arith.constant 1 : i32
    %0 = arith.muli %arg0, %c1_i32 : i32
    %1 = tpu.iota {dimensions = array<i32: 0>} : vector<16x16xi32>
    %2 = tpu.iota {dimensions = array<i32: 1>} : vector<16x16xi32>
    %c0_i32 = arith.constant 0 : i32
    %3 = arith.addi %0, %c0_i32 : i32
    %c0 = arith.constant 0 : index
    %4 = arith.index_cast %3 : i32 to index
    %5 = memref.load %arg1[%c0, %4] : memref<2x2xi32, #tpu.memory_space<smem>>
    %c1 = arith.constant 1 : index
    %6 = arith.index_cast %3 : i32 to index
    %7 = memref.load %arg1[%c1, %6] : memref<2x2xi32, #tpu.memory_space<smem>>
    %8 = arith.index_cast %c0_i32 : i32 to index
    %c0_0 = arith.constant 0 : index
    %c0_1 = arith.constant 0 : index
    %c0_2 = arith.constant 0 : index
    %9 = vector.load %arg2[%8, %c0_0, %c0_1, %c0_2] : memref<1x4x16x16xf32, #tpu.memory_space<vmem>>, vector<1x4x16x16xf32>
    %10 = vector.shape_cast %9 : vector<1x4x16x16xf32> to vector<4x16x16xf32>
    %c0_3 = arith.constant 0 : index
    %c8 = arith.constant 8 : index
    %c0_4 = arith.constant 0 : index
    %11 = vector.load %arg4[%c0_3, %c8, %c0_4] : memref<4x28x16xf32, #tpu.memory_space<vmem>>, vector<4x16x16xf32>
    tpu.vector_store %arg4[%c0_3, %c8, %c0_4], %10 {strides = array<i32>} : memref<4x28x16xf32, #tpu.memory_space<vmem>>, vector<4x16x16xf32>,
    %12 = vector.extract_strided_slice %10 {offsets = [0, 0, 0], sizes = [4, 1, 16], strides = [1, 1, 1]} : vector<4x16x16xf32> to vector<4x1x16xf32>
    %13 = vector.shape_cast %12 : vector<4x1x16xf32> to vector<4x1x16xf32>
    %14 = vector.broadcast %13 : vector<4x1x16xf32> to vector<4x4x16xf32>
    %c0_5 = arith.constant 0 : index
    %c4 = arith.constant 4 : index
    %c0_6 = arith.constant 0 : index
    %15 = vector.load %arg4[%c0_5, %c4, %c0_6] : memref<4x28x16xf32, #tpu.memory_space<vmem>>, vector<4x4x16xf32>
    tpu.vector_store %arg4[%c0_5, %c4, %c0_6], %14 {strides = array<i32>} : memref<4x28x16xf32, #tpu.memory_space<vmem>>, vector<4x4x16xf32>,
    %16 = vector.extract_strided_slice %10 {offsets = [0, 15, 0], sizes = [4, 1, 16], strides = [1, 1, 1]} : vector<4x16x16xf32> to vector<4x1x16xf32>
    %17 = vector.shape_cast %16 : vector<4x1x16xf32> to vector<4x1x16xf32>
    %18 = vector.broadcast %17 : vector<4x1x16xf32> to vector<4x4x16xf32>
    %c0_7 = arith.constant 0 : index
    %c24 = arith.constant 24 : index
    %c0_8 = arith.constant 0 : index
    %19 = vector.load %arg4[%c0_7, %c24, %c0_8] : memref<4x28x16xf32, #tpu.memory_space<vmem>>, vector<4x4x16xf32>
    tpu.vector_store %arg4[%c0_7, %c24, %c0_8], %18 {strides = array<i32>} : memref<4x28x16xf32, #tpu.memory_space<vmem>>, vector<4x4x16xf32>,
    %c4_i32 = arith.constant 4 : i32
    %20 = arith.addi %7, %c4_i32 : i32
    %c0_9 = arith.constant 0 : index
    %21 = arith.index_cast %20 : i32 to index
    %c0_10 = arith.constant 0 : index
    %22 = vector.load %arg4[%c0_9, %21, %c0_10] : memref<4x28x16xf32, #tpu.memory_space<vmem>>, vector<4x16x16xf32>
    %23 = vector.broadcast %5 : i32 to vector<16x16xi32>
    %24 = arith.addi %2, %23 : vector<16x16xi32>
    %c4_i32_11 = arith.constant 4 : i32
    %25 = vector.broadcast %c4_i32_11 : i32 to vector<16x16xi32>
    %26 = arith.subi %24, %25 : vector<16x16xi32>
    %c0_i32_12 = arith.constant 0 : i32
    %c15_i32 = arith.constant 15 : i32
    %27 = vector.broadcast %c0_i32_12 : i32 to vector<16x16xi32>
    %28 = arith.maxsi %27, %26 : vector<16x16xi32>
    %29 = vector.broadcast %c15_i32 : i32 to vector<16x16xi32>
    %30 = arith.minsi %29, %28 : vector<16x16xi32>
    %31 = arith.cmpi eq, %1, %30 : vector<16x16xi32>
    %32 = arith.extui %31 : vector<16x16xi1> to vector<16x16xi32>
    %33 = arith.sitofp %32 : vector<16x16xi32> to vector<16x16xf32>
    %34 = vector.shape_cast %22 : vector<4x16x16xf32> to vector<64x16xf32>
    %cst = arith.constant dense<0.000000e+00> : vector<64x16xf32>
    %35 = tpu.matmul %34, %33, %cst {dimension_numbers = #tpu.dot_dimension_numbers<[1], [0], [0], [1], [0, 0, 1, 1], [], []>} : vector<64x16xf32>, vector<16x16xf32>, vector<64x16xf32> -> vector<64x16xf32>
    %36 = vector.shape_cast %35 : vector<64x16xf32> to vector<4x16x16xf32>
    %37 = arith.index_cast %c0_i32 : i32 to index
    %c0_13 = arith.constant 0 : index
    %c0_14 = arith.constant 0 : index
    %c0_15 = arith.constant 0 : index
    %38 = vector.load %arg3[%37, %c0_13, %c0_14, %c0_15] : memref<1x4x16x16xf32, #tpu.memory_space<vmem>>, vector<1x4x16x16xf32>
    %39 = vector.shape_cast %38 : vector<1x4x16x16xf32> to vector<4x16x16xf32>
    %40 = vector.shape_cast %36 : vector<4x16x16xf32> to vector<1x4x16x16xf32>
    tpu.vector_store %arg3[%37, %c0_13, %c0_14, %c0_15], %40 {strides = array<i32>} : memref<1x4x16x16xf32, #tpu.memory_space<vmem>>, vector<1x4x16x16xf32>,
    %c1_i32_16 = arith.constant 1 : i32
    return
  }
  func.func @transform_0(%arg0: i32, %arg1: memref<2x2xi32, #tpu.memory_space<smem>>) -> (i32, i32, i32, i32) {
    %c0_i32 = arith.constant 0 : i32
    %c0_i32_0 = arith.constant 0 : i32
    %c0_i32_1 = arith.constant 0 : i32
    %c0_i32_2 = arith.constant 0 : i32
    return %arg0, %c0_i32, %c0_i32_0, %c0_i32_1 : i32, i32, i32, i32
  }
  func.func @transform_1(%arg0: i32, %arg1: memref<2x2xi32, #tpu.memory_space<smem>>) -> (i32, i32, i32, i32) {
    %c0_i32 = arith.constant 0 : i32
    %c0_i32_0 = arith.constant 0 : i32
    %c0_i32_1 = arith.constant 0 : i32
    %c0_i32_2 = arith.constant 0 : i32
    return %arg0, %c0_i32, %c0_i32_0, %c0_i32_1 : i32, i32, i32, i32
  }
}

</mosaic_0001>

<llo_original>
// kernel: tpu_custom_call.1
$region0: #{tpu_custom_call.1}
  #allocation0 [shape = 'u32[]', space=smem, size = 0x4, offset = 0x4, fixed_abs, tag = 'smem constant byte address 0x4 - core index']
  #allocation1 [shape = 'u32[144,128]{1,0:T(1,128)}', space=vmem, size = 0x12000, scoped, tag = 'internal scratch']
  #allocation2 [shape = 'f32[4,28,16]{2,1,0:T(8,128)}', space=vmem, size = 0x10000, scoped, tag = 'scratch operand']
  #allocation3 [shape = 's32[1]{0}', space=sflag, size = 0x4, scoped, tag = 'scoped memory for tpu_custom_call.1']
  #allocation4 [shape = 'u8[1024]{0}', space=smem, size = 0x400, scoped, tag = 'prefetched SMEM operand 0']
  %s0 = inlined_call_operand.hbm [shape: s32[2,2], index: 0, kind: input, shape index: {}]
  %s1 = inlined_call_operand.hbm [shape: f32[2,4,16,16], index: 1, kind: input, shape index: {}]
  %s2 = inlined_call_operand.hbm [shape: f32[2,4,16,16], index: 2, kind: output, shape index: {}]
  %s3 = sld [smem:[#allocation0]]
  $region41: #{tpu_custom_call.1} parent=0
    _
  %s5 = ssub.s32 1, %s3
  %s6 = scalar_select 0, %s5, %s3
  %8 = dma.hbm_to_smem %s0, 32, [#allocation4], [#allocation3]
  %9 = dma.done [#allocation3], 32
  %10 = sfence
  $region1: #{tpu_custom_call.1} parent=0
    #allocation5 [shape = 'u8[65536]{0}', space=vmem, size = 0x10000, scoped, tag = 'input window, operand 1']
    #allocation6 [shape = 's32[2]{0}', space=sflag, size = 0x8, scoped, tag = 'scoped memory for tpu_custom_call.1']
    #allocation7 [shape = 's32[2]{0}', space=sflag, size = 0x8, scoped, tag = 'scoped memory for tpu_custom_call.1']
    #allocation8 [shape = 'u8[65536]{0}', space=vmem, size = 0x10000, scoped, tag = 'output window, operand 0']
    %11 = vsyncpa [#allocation6], 0
    %s12 = scalar_lea.sflag [#allocation6], 1
    %13 = vsyncpa %s12, 0
    %14 = vsyncpa [#allocation7], 0
    %s15 = scalar_lea.sflag [#allocation7], 1
    %16 = vsyncpa %s15, 0
    loop: start=0, step=1, limit=4
    $region2: #{tpu_custom_call.1} parent=1 // loop_pre_header
      _
    $region3: #{tpu_custom_call.1} parent=1 // loop_header
      %s18 = sphi 0, %s22
      %p19 = scmp.ge.s32.totalorder %s18, 4
      %s28 = sphi 0, %s30
      %s31 = sphi 0, %s28
      %s32 = sphi 0, %s31
      %s48 = sphi 0, %s32
      %s54 = sphi 0, %s56
      %s57 = sphi 0, %s54
      %s58 = sphi 0, %s57
      %s74 = sphi 0, %s58
    $region4: #{tpu_custom_call.1} parent=1 // loop_header_branch
      %21 = sbr.rel (%p19) target = $region8
    $region5: #{tpu_custom_call.1} parent=1 // loop_body
      %s23 = ssub.s32 %s18, 1
      %s24 = ssub.s32 %s18, 2
      %s25 = sadd.s32 %s18, 1
      %s26 = ssub.s32 %s18, %s25
      %p27 = scmp.eq.s32.totalorder %s26, 0
      %s29 = sadd.s32 %s28, 1
      %s30 = scalar_select %p27, %s28, %s29
      %p33 = pneg %p27
      %p34 = scmp.eq.s32.totalorder %s18, 1
      %p35 = por %p33, %p34
      %p36 = scmp.ne.s32.totalorder %s28, %s31
      %p37 = scmp.eq.s32.totalorder %s18, 0
      %p38 = por %p36, %p37
      %p39 = scmp.ne.s32.totalorder %s28, %s31
      %p40 = scmp.eq.s32.totalorder %s23, 1
      %p41 = por %p39, %p40
      %p42 = scmp.ne.s32.totalorder %s31, %s32
      %p43 = scmp.eq.s32.totalorder %s23, 0
      %p44 = por %p42, %p43
      %p45 = scmp.ne.s32.totalorder %s31, %s32
      %p46 = scmp.eq.s32.totalorder %s24, 1
      %p47 = por %p45, %p46
      %p49 = scmp.ne.s32.totalorder %s32, %s48
      %p50 = scmp.eq.s32.totalorder %s24, 0
      %p51 = por %p49, %p50
      %s52 = ssub.s32 %s18, %s25
      %p53 = scmp.eq.s32.totalorder %s52, 0
      %s55 = sadd.s32 %s54, 1
      %s56 = scalar_select %p53, %s54, %s55
      %p59 = pneg %p53
      %p60 = scmp.eq.s32.totalorder %s18, 1
      %p61 = por %p59, %p60
      %p62 = scmp.ne.s32.totalorder %s54, %s57
      %p63 = scmp.eq.s32.totalorder %s18, 0
      %p64 = por %p62, %p63
      %p65 = scmp.ne.s32.totalorder %s54, %s57
      %p66 = scmp.eq.s32.totalorder %s23, 1
      %p67 = por %p65, %p66
      %p68 = scmp.ne.s32.totalorder %s57, %s58
      %p69 = scmp.eq.s32.totalorder %s23, 0
      %p70 = por %p68, %p69
      %p71 = scmp.ne.s32.totalorder %s57, %s58
      %p72 = scmp.eq.s32.totalorder %s24, 1
      %p73 = por %p71, %p72
      %p75 = scmp.ne.s32.totalorder %s58, %s74
      %p76 = scmp.eq.s32.totalorder %s24, 0
      %p77 = por %p75, %p76
      %p78 = scmp.le.s32.totalorder 1, %s18
      %p79 = scmp.lt.s32.totalorder %s18, 3
      %p80 = pnand %p78, %p79
      %p81 = pneg %p80
      // Predicated region
      $region9: #{tpu_custom_call.1} parent=5 // pred_check
        _
      $region10: #{tpu_custom_call.1} parent=5 // pred_check_branch
        %83 = sbr.rel (%p80) target = $region12
      $region11: #{tpu_custom_call.1} parent=5 // pred_region
        %s84 = ssub.s32 %s18, 1
      $region12: #{tpu_custom_call.1} parent=5 // pred_fallthru
        _
      %p85 = scmp.lt.s32.totalorder %s18, 2
      // Predicated region
      $region13: #{tpu_custom_call.1} parent=5 // pred_check
        %p86 = pneg %p85
      $region14: #{tpu_custom_call.1} parent=5 // pred_check_branch
        %88 = sbr.rel (%p86) target = $region16
      $region15: #{tpu_custom_call.1} parent=5 // pred_region
        // Predicated region
        $region17: #{tpu_custom_call.1} parent=15 // pred_check
          %p89 = pneg %p38
        $region18: #{tpu_custom_call.1} parent=15 // pred_check_branch
          %91 = sbr.rel (%p89) target = $region20
        $region19: #{tpu_custom_call.1} parent=15 // pred_region
          %s92 = sand.u32 %s28, 1
          %s93 = scalar_lea.sflag [#allocation6], %s92
          %s94 = sand.u32 %s28, 1
          %s95 = smul.addr %s94, 64
          %s96 = scalar_lea.vmem [#allocation5], %s95
          %s98 = ssub.s32 1024, 1024
          %99 = vsyncadd %s93, %s98
          %s100 = smul.addr %s18, 8
          %s101 = smul.addr %s100, 128
          %s102 = scalar_lea.hbm %s1, %s101
          %s103 = sshll.u32 %s96, 4
          %s104 = int_to_ptr.vmem [resolvable:$true] %s103
          %109 = dma.hbm_to_vmem [thread:$0]  %s102, 1024, %s104, %s93, 128, 128, 8
        $region20: #{tpu_custom_call.1} parent=15 // pred_fallthru
          _
      $region16: #{tpu_custom_call.1} parent=5 // pred_fallthru
        _
      %p110 = scmp.le.s32.totalorder 1, %s18
      %p111 = scmp.lt.s32.totalorder %s18, 3
      %p112 = pnand %p110, %p111
      %p113 = pneg %p112
      // Predicated region
      $region21: #{tpu_custom_call.1} parent=5 // pred_check
        _
      $region22: #{tpu_custom_call.1} parent=5 // pred_check_branch
        %115 = sbr.rel (%p112) target = $region24
      $region23: #{tpu_custom_call.1} parent=5 // pred_region
        %s116 = ssub.s32 %s18, 1
        %s117 = sand.u32 %s31, 1
        %s118 = scalar_lea.sflag [#allocation6], %s117
        %s119 = sand.u32 %s31, 1
        %s120 = smul.addr %s119, 64
        %s121 = scalar_lea.vmem [#allocation5], %s120
        // Predicated region
        $region25: #{tpu_custom_call.1} parent=23 // pred_check
          %p122 = pneg %p44
        $region26: #{tpu_custom_call.1} parent=23 // pred_check_branch
          %124 = sbr.rel (%p122) target = $region28
        $region27: #{tpu_custom_call.1} parent=23 // pred_region
          %125 = dma.done %s118, 1024
        $region28: #{tpu_custom_call.1} parent=23 // pred_fallthru
          _
        %s126 = sand.u32 %s31, 1
        %s127 = scalar_lea.sflag [#allocation6], %s126
        %s128 = sand.u32 %s31, 1
        %s129 = smul.addr %s128, 64
        %s130 = scalar_lea.vmem [#allocation5], %s129
        %p131 = pneg %p44
        %p132 = pneg %p41
        %p133 = pneg %p70
        %p134 = pneg %p67
        %s135 = sand.u32 %s57, 1
        %s136 = scalar_lea.sflag [#allocation7], %s135
        %s137 = sand.u32 %s57, 1
        %s138 = smul.addr %s137, 64
        %s139 = scalar_lea.vmem [#allocation8], %s138
        %v140 = vlaneseq
        %v141 = vshrl.u32 %v140, 7
        %v142 = vadd.s32 %v141, 8
        %v143 = vlaneseq
        %v144 = vand.u32 %v143, 127
        %s145 = sld [smem:[#allocation4 + %s23]]
        %s146 = sshra.s32 %s23, 7
        %s147 = sand.u32 %s23, 127
        %s148 = sadd.s32 %s146, 1
        %s149 = smul.u32 %s148, 128
        %s150 = sshra.s32 %s23, 7
        %s151 = sand.u32 %s23, 127
        %s152 = sadd.s32 %s149, %s151
        %s153 = sld [smem:[#allocation4 + %s152]]
        %v154 = vld [vmem:[%s121] sm:$0xff]
        %v155 = vld [vmem:[%s121 + $0x8] sm:$0xff]
        %v156 = vld [vmem:[%s121 + $0x10] sm:$0xff]
        %v157 = vld [vmem:[%s121 + $0x18] sm:$0xff]
        %v158 = vld [vmem:[%s121 + $0x20] sm:$0xff]
        %v159 = vld [vmem:[%s121 + $0x28] sm:$0xff]
        %v160 = vld [vmem:[%s121 + $0x30] sm:$0xff]
        %v161 = vld [vmem:[%s121 + $0x38] sm:$0xff]
        %vm162 = vcmask 130048
        %163 = vst.msk [vmem:[#allocation2 + $0x8] sm:$0xff] %vm162, %v154
        %164 = vst.msk [vmem:[#allocation2 + $0x10] sm:$0xff] %vm162, %v155
        %165 = vst.msk [vmem:[#allocation2 + $0x28] sm:$0xff] %vm162, %v156
        %166 = vst.msk [vmem:[#allocation2 + $0x30] sm:$0xff] %vm162, %v157
        %167 = vst.msk [vmem:[#allocation2 + $0x48] sm:$0xff] %vm162, %v158
        %168 = vst.msk [vmem:[#allocation2 + $0x50] sm:$0xff] %vm162, %v159
        %169 = vst.msk [vmem:[#allocation2 + $0x68] sm:$0xff] %vm162, %v160
        %170 = vst.msk [vmem:[#allocation2 + $0x70] sm:$0xff] %vm162, %v161
        %v171 = vlaneseq
        %v172 = vshrl.u32 %v171, 7
        %v173 = vsub.s32 0, %v172
        %v174 = vrot.slane %v154, %v173
        %v175 = vlaneseq
        %v176 = vshrl.u32 %v175, 7
        %v177 = vsub.s32 0, %v176
        %v178 = vrot.slane %v156, %v177
        %v179 = vlaneseq
        %v180 = vshrl.u32 %v179, 7
        %v181 = vsub.s32 0, %v180
        %v182 = vrot.slane %v158, %v181
        %v183 = vlaneseq
        %v184 = vshrl.u32 %v183, 7
        %v185 = vsub.s32 0, %v184
        %v186 = vrot.slane %v160, %v185
        %vm187 = vcmask 125952
        %188 = vst.msk [vmem:[#allocation2 + $0x4] sm:$0xf] %vm187, %v174
        %189 = vst.msk [vmem:[#allocation2 + $0x24] sm:$0xf] %vm187, %v178
        %190 = vst.msk [vmem:[#allocation2 + $0x44] sm:$0xf] %vm187, %v182
        %191 = vst.msk [vmem:[#allocation2 + $0x64] sm:$0xf] %vm187, %v186
        %v192 = vlaneseq
        %v193 = vshrl.u32 %v192, 7
        %v194 = vsub.s32 7, %v193
        %v195 = vrot.slane %v155, %v194
        %v196 = vlaneseq
        %v197 = vshrl.u32 %v196, 7
        %v198 = vsub.s32 7, %v197
        %v199 = vrot.slane %v157, %v198
        %v200 = vlaneseq
        %v201 = vshrl.u32 %v200, 7
        %v202 = vsub.s32 7, %v201
        %v203 = vrot.slane %v159, %v202
        %v204 = vlaneseq
        %v205 = vshrl.u32 %v204, 7
        %v206 = vsub.s32 7, %v205
        %v207 = vrot.slane %v161, %v206
        %208 = vst.msk [vmem:[#allocation2 + $0x18] sm:$0xf] %vm187, %v195
        %209 = vst.msk [vmem:[#allocation2 + $0x38] sm:$0xf] %vm187, %v199
        %210 = vst.msk [vmem:[#allocation2 + $0x58] sm:$0xf] %vm187, %v203
        %211 = vst.msk [vmem:[#allocation2 + $0x78] sm:$0xf] %vm187, %v207
        %s212 = sadd.s32 %s153, 4
        %s213 = scalar_lea.vmem [#allocation2], %s212
        %v214 = vld [vmem:[%s213] sm:$0xff]
        %v215 = vld [vmem:[%s213 + $0x8] sm:$0xff]
        %v216 = vld [vmem:[%s213 + $0x20] sm:$0xff]
        %v217 = vld [vmem:[%s213 + $0x28] sm:$0xff]
        %v218 = vld [vmem:[%s213 + $0x40] sm:$0xff]
        %v219 = vld [vmem:[%s213 + $0x48] sm:$0xff]
        %v220 = vld [vmem:[%s213 + $0x60] sm:$0xff]
        %v221 = vld [vmem:[%s213 + $0x68] sm:$0xff]
        %v222 = vstv %s145
        %v223 = vadd.s32 %v144, %v222
        %v224 = vsub.s32 %v223, 4
        %vm225 = vcmp.gt.s32.totalorder %v224, 0
        %v226 = vsel %vm225, %v224, 0
        %vm227 = vcmp.lt.s32.totalorder %v226, 15
        %v228 = vsel %vm227, %v226, 15
        %vm229 = vcmp.eq.s32.totalorder %v141, %v228
        %vm230 = vcmp.eq.s32.totalorder %v142, %v228
        %v231 = vsel %vm229, 1, 0
        %v232 = vsel %vm230, 1, 0
        %v233 = vcvt.s32.f32 %v231
        %v234 = vcvt.s32.f32 %v232
        %v236 = vsel %vm162, %v214, 0
        %v239 = vsel %vm162, %v215, 0
        %v242 = vsel %vm162, %v216, 0
        %v245 = vsel %vm162, %v217, 0
        %v248 = vsel %vm162, %v218, 0
        %v251 = vsel %vm162, %v219, 0
        %v254 = vsel %vm162, %v220, 0
        %v257 = vsel %vm162, %v221, 0
        %259 = vmatprep.subr.mxu0 0.0
        %260 = vmatpush1.msra.mxu0 0.0
        %261 = vmatprep.subr.mxu0 0.0
        %262 = vmatpush1.msra.mxu0 0.0
        %263 = vmatprep.subr.mxu0 0.0
        %264 = vmatpush1.msra.mxu0 0.0
        %265 = vmatprep.subr.mxu0 0.0
        %266 = vmatpush1.msra.mxu0 0.0
        %267 = vmatprep.subr.mxu0 0.0
        %268 = vmatpush1.msra.mxu0 0.0
        %269 = vmatprep.subr.mxu0 0.0
        %270 = vmatpush1.msra.mxu0 0.0
        %271 = vmatprep.subr.mxu0 0.0
        %272 = vmatpush1.msra.mxu0 0.0
        %273 = vmatprep.subr.mxu0 0.0
        %274 = vmatpush1.msra.mxu0 0.0
        %275 = vmatprep.subr.mxu0 0.0
        %276 = vmatpush1.msra.mxu0 0.0
        %277 = vmatprep.subr.mxu0 0.0
        %278 = vmatpush1.msra.mxu0 0.0
        %279 = vmatprep.subr.mxu0 0.0
        %280 = vmatpush1.msra.mxu0 0.0
        %281 = vmatprep.subr.mxu0 0.0
        %282 = vmatpush1.msra.mxu0 0.0
        %283 = vmatprep.subr.mxu0 0.0
        %284 = vmatpush1.msra.mxu0 0.0
        %285 = vmatprep.subr.mxu0 0.0
        %286 = vmatpush1.msra.mxu0 0.0
        %287 = vmatprep.subr.mxu0 0.0
        %288 = vmatpush1.msra.mxu0 %v234
        %289 = vmatprep.subr.mxu0 0.0
        %290 = vmatpush1.msra.mxu0 %v233
        %291 = vmatprep.subr.mxu0 0.0
        %292 = vmatpush2.msra.mxu0 0.0
        %293 = vmatprep.subr.mxu0 0.0
        %294 = vmatpush2.msra.mxu0 0.0
        %295 = vmatprep.subr.mxu0 0.0
        %296 = vmatpush2.msra.mxu0 0.0
        %297 = vmatprep.subr.mxu0 0.0
        %298 = vmatpush2.msra.mxu0 0.0
        %299 = vmatprep.subr.mxu0 0.0
        %300 = vmatpush2.msra.mxu0 0.0
        %301 = vmatprep.subr.mxu0 0.0
        %302 = vmatpush2.msra.mxu0 0.0
        %303 = vmatprep.subr.mxu0 0.0
        %304 = vmatpush2.msra.mxu0 0.0
        %305 = vmatprep.subr.mxu0 0.0
        %306 = vmatpush2.msra.mxu0 0.0
        %307 = vmatprep.subr.mxu0 0.0
        %308 = vmatpush2.msra.mxu0 0.0
        %309 = vmatprep.subr.mxu0 0.0
        %310 = vmatpush2.msra.mxu0 0.0
        %311 = vmatprep.subr.mxu0 0.0
        %312 = vmatpush2.msra.mxu0 0.0
        %313 = vmatprep.subr.mxu0 0.0
        %314 = vmatpush2.msra.mxu0 0.0
        %315 = vmatprep.subr.mxu0 0.0
        %316 = vmatpush2.msra.mxu0 0.0
        %317 = vmatprep.subr.mxu0 0.0
        %318 = vmatpush2.msra.mxu0 0.0
        %319 = vmatprep.subr.mxu0 0.0
        %320 = vmatpush2.msra.mxu0 0.0
        %321 = vmatprep.subr.mxu0 0.0
        %322 = vmatpush2.msra.mxu0 0.0
        %323 = vmatprep.mubr.f32.mxu0 0.0
        %324 = vmatmul.mubr.f32.gmra.mxu0 %v236
        %v325 = vpop.f32.mrf.mxu0
        %v326 = vadd.f32 0.0, %v325
        %v327 = vpop.f32.mrf.mxu0
        %328 = vmatprep.mubr.f32.mxu0 0.0
        %329 = vmatmul.mubr.f32.gmra.mxu0 %v239
        %v330 = vpop.f32.mrf.mxu0
        %v331 = vadd.f32 0.0, %v330
        %v332 = vpop.f32.mrf.mxu0
        %333 = vmatprep.mubr.f32.mxu0 0.0
        %334 = vmatmul.mubr.f32.gmra.mxu0 %v242
        %v335 = vpop.f32.mrf.mxu0
        %v336 = vadd.f32 0.0, %v335
        %v337 = vpop.f32.mrf.mxu0
        %338 = vmatprep.mubr.f32.mxu0 0.0
        %339 = vmatmul.mubr.f32.gmra.mxu0 %v245
        %v340 = vpop.f32.mrf.mxu0
        %v341 = vadd.f32 0.0, %v340
        %v342 = vpop.f32.mrf.mxu0
        %343 = vmatprep.mubr.f32.mxu0 0.0
        %344 = vmatmul.mubr.f32.gmra.mxu0 %v248
        %v345 = vpop.f32.mrf.mxu0
        %v346 = vadd.f32 0.0, %v345
        %v347 = vpop.f32.mrf.mxu0
        %348 = vmatprep.mubr.f32.mxu0 0.0
        %349 = vmatmul.mubr.f32.gmra.mxu0 %v251
        %v350 = vpop.f32.mrf.mxu0
        %v351 = vadd.f32 0.0, %v350
        %v352 = vpop.f32.mrf.mxu0
        %353 = vmatprep.mubr.f32.mxu0 0.0
        %354 = vmatmul.mubr.f32.gmra.mxu0 %v254
        %v355 = vpop.f32.mrf.mxu0
        %v356 = vadd.f32 0.0, %v355
        %v357 = vpop.f32.mrf.mxu0
        %358 = vmatprep.mubr.f32.mxu0 0.0
        %359 = vmatmul.mubr.f32.gmra.mxu0 %v257
        %v360 = vpop.f32.mrf.mxu0
        %v361 = vadd.f32 0.0, %v360
        %v362 = vpop.f32.mrf.mxu0
        %363 = vdwg.mxu0
        %364 = vst.msk [vmem:[%s139] sm:$0xff] %vm162, %v326
        %365 = vst.msk [vmem:[%s139 + $0x8] sm:$0xff] %vm162, %v331
        %366 = vst.msk [vmem:[%s139 + $0x10] sm:$0xff] %vm162, %v336
        %367 = vst.msk [vmem:[%s139 + $0x18] sm:$0xff] %vm162, %v341
        %368 = vst.msk [vmem:[%s139 + $0x20] sm:$0xff] %vm162, %v346
        %369 = vst.msk [vmem:[%s139 + $0x28] sm:$0xff] %vm162, %v351
        %370 = vst.msk [vmem:[%s139 + $0x30] sm:$0xff] %vm162, %v356
        %371 = vst.msk [vmem:[%s139 + $0x38] sm:$0xff] %vm162, %v361
        %s372 = sand.u32 %s57, 1
        %s373 = scalar_lea.sflag [#allocation7], %s372
        %s374 = sand.u32 %s57, 1
        %s375 = smul.addr %s374, 64
        %s376 = scalar_lea.vmem [#allocation8], %s375
        // Predicated region
        $region29: #{tpu_custom_call.1} parent=23 // pred_check
          %p377 = pneg %p67
        $region30: #{tpu_custom_call.1} parent=23 // pred_check_branch
          %379 = sbr.rel (%p377) target = $region32
        $region31: #{tpu_custom_call.1} parent=23 // pred_region
          %s381 = ssub.s32 1024, 1024
          %382 = vsyncadd %s373, %s381
          %s383 = smul.addr %s23, 8
          %s384 = smul.addr %s383, 128
          %s385 = scalar_lea.hbm %s2, %s384
          %s386 = sshll.u32 %s376, 4
          %s387 = int_to_ptr.vmem [resolvable:$true] %s386
          %392 = dma.vmem_to_hbm [thread:$0]  %s387, 1024, %s385, %s373, 128, 128, 8
        $region32: #{tpu_custom_call.1} parent=23 // pred_fallthru
          _
      $region24: #{tpu_custom_call.1} parent=5 // pred_fallthru
        _
      %p393 = scmp.le.s32.totalorder 2, %s18
      // Predicated region
      $region33: #{tpu_custom_call.1} parent=5 // pred_check
        %p394 = pneg %p393
      $region34: #{tpu_custom_call.1} parent=5 // pred_check_branch
        %396 = sbr.rel (%p394) target = $region36
      $region35: #{tpu_custom_call.1} parent=5 // pred_region
        %s397 = ssub.s32 %s18, 2
        // Predicated region
        $region37: #{tpu_custom_call.1} parent=35 // pred_check
          %p398 = pneg %p73
        $region38: #{tpu_custom_call.1} parent=35 // pred_check_branch
          %400 = sbr.rel (%p398) target = $region40
        $region39: #{tpu_custom_call.1} parent=35 // pred_region
          %s401 = sand.u32 %s58, 1
          %s402 = scalar_lea.sflag [#allocation7], %s401
          %s403 = sand.u32 %s58, 1
          %s404 = smul.addr %s403, 64
          %s405 = scalar_lea.vmem [#allocation8], %s404
          %406 = dma.done %s402, 1024
        $region40: #{tpu_custom_call.1} parent=35 // pred_fallthru
          _
      $region36: #{tpu_custom_call.1} parent=5 // pred_fallthru
        _
    $region6: #{tpu_custom_call.1} parent=1 // loop_footer
      %s22 = sadd.s32 1, %s18
    $region7: #{tpu_custom_call.1} parent=1 // loop_footer_branch
      %17 = sbr.rel target = $region3
    $region8: #{tpu_custom_call.1} parent=1 // loop_exit
      _
    %407 = vsyncpa [#allocation6], 1
    %s408 = scalar_lea.sflag [#allocation6], 1
    %409 = vsyncpa %s408, 1
    %410 = vsyncpa [#allocation7], 1
    %s411 = scalar_lea.sflag [#allocation7], 1
    %412 = vsyncpa %s411, 1

</llo_original>
